<compile_context>
chip_gen: v7x
topology: tpu7x:2x2x1
jax: 0.10.0
libtpu: 0.0.40
codegen_flags: <defaults>
</compile_context>

<pallas_src>
import jax
import jax.numpy as jnp
from jax import lax
from jax.experimental import pallas as pl
from jax.experimental.pallas import tpu as pltpu

VOCAB = 100
VOCAB_PAD = 128  # vocab padded to one full lane group / MXU K dim


def _round_up(x, m):
    return (x + m - 1) // m * m


def _init_v_kernel(zin_ref, emb_ref, wb1_ref, wb23_ref,
                   o_emb_ref, o1_ref, o2_ref, o3_ref):
    """One row tile of the fused init_v forward.

    zin_ref  : (TN, 4)        f32  packed [z (as float), z1, z2, z3]
    emb_ref  : (128, H)       f32  table rows [0:100) real, rows [100:128) zero
    wb1_ref  : (2, 50)        f32  rows = [w1, b1]
    wb23_ref : (4, H)         f32  rows = [w2, w3, b2, b3]
    o_emb_ref: (TN, H)   o1_ref: (TN, 50)   o2_ref/o3_ref: (TN, H)
    """
    zin = zin_ref[...]
    tn = zin.shape[0]

    # ---- embedding lookup: one-hot (TN,128) x (128,H) on the MXU ----------
    z_idx = zin[:, 0:1].astype(jnp.int32)                     # exact (z < 100)
    ids = lax.broadcasted_iota(jnp.int32, (tn, VOCAB_PAD), 1)
    one_hot = (ids == z_idx).astype(jnp.float32)               # (TN, 128)
    # precision=HIGHEST keeps full f32 operand precision on the MXU.
    o_emb_ref[...] = jnp.dot(one_hot, emb_ref[...],
                             precision=lax.Precision.HIGHEST,
                             preferred_element_type=jnp.float32)

    # ---- three fused Linear(1->K): broadcast FMAs on the VPU ---------------
    o1_ref[...] = zin[:, 1:2] * wb1_ref[0:1, :] + wb1_ref[1:2, :]
    o2_ref[...] = zin[:, 2:3] * wb23_ref[0:1, :] + wb23_ref[2:3, :]
    o3_ref[...] = zin[:, 3:4] * wb23_ref[1:2, :] + wb23_ref[3:4, :]


def init_v_forward(z, z1, z2, z3, params, *, row_tile=None):
    """z: (N,) int; z1,z2,z3: (N,) float. Returns (emb, lin1, lin2, lin3)."""
    n = z.shape[0]
    emb_w = params["emb"].astype(jnp.float32)           # (100, H)
    H = emb_w.shape[1]

    # --- parameter prep (done once in the wrapper) ---------------------------
    emb_pad = jnp.zeros((VOCAB_PAD, H), jnp.float32).at[:VOCAB, :].set(emb_w)
    wb1 = jnp.concatenate(
        [params["w1"].reshape(1, 50), params["b1"].reshape(1, 50)],
        axis=0).astype(jnp.float32)                       # (2, 50)
    wb23 = jnp.concatenate(
        [params["w2"].reshape(1, H), params["w3"].reshape(1, H),
         params["b2"].reshape(1, H), params["b3"].reshape(1, H)],
        axis=0).astype(jnp.float32)                       # (4, H)

    # --- pack the four per-row scalars into a single (N, 4) f32 stream ------
    zin = jnp.stack([z.astype(jnp.float32), z1.astype(jnp.float32),
                     z2.astype(jnp.float32), z3.astype(jnp.float32)], axis=-1)

    # --- row tile: VMEM-budget driven, near-equal tiles, no row padding -----
    # Moving VMEM per row (double-buffered, each buffer lane-pads to 128):
    lanes = lambda k: _round_up(k, 128)
    vmem_per_row = 2 * (lanes(4) + 3 * lanes(H) + lanes(50)) * 4
    budget = 20 * 1024 * 1024                 # headroom under the 32 MiB limit
    max_tile = max(8, (budget // vmem_per_row) // 8 * 8)
    if row_tile is None:
        row_tile = max_tile
    row_tile = max(8, min(row_tile, max_tile))

    num_tiles = pl.cdiv(n, row_tile)
    if num_tiles == 1 and n >= 4096:
        num_tiles = 2                         # keep both v7x TensorCores busy
    tn = _round_up(pl.cdiv(n, num_tiles), 8)
    grid = (pl.cdiv(n, tn),)
    # NOTE: the last block may be partial (n % tn != 0). Out-of-bounds input
    # rows hold unspecified values; the corresponding output rows are never
    # written back, so results are exact without any row padding or slicing.

    cost = pl.CostEstimate(
        flops=2 * n * VOCAB_PAD * H + 2 * n * (3 * H + 50),
        transcendentals=0,
        bytes_accessed=4 * (zin.size + emb_pad.size + wb1.size + wb23.size
                            + n * (3 * H + 50)),
    )

    o_emb, o1, o2, o3 = pl.pallas_call(
        _init_v_kernel,
        out_shape=(
            jax.ShapeDtypeStruct((n, H), jnp.float32),
            jax.ShapeDtypeStruct((n, 50), jnp.float32),
            jax.ShapeDtypeStruct((n, H), jnp.float32),
            jax.ShapeDtypeStruct((n, H), jnp.float32),
        ),
        grid=grid,
        in_specs=[
            pl.BlockSpec((tn, 4), lambda i: (i, 0)),            # packed scalars
            pl.BlockSpec((VOCAB_PAD, H), lambda i: (0, 0)),     # resident table
            pl.BlockSpec((2, 50), lambda i: (0, 0)),            # resident w1/b1
            pl.BlockSpec((4, H), lambda i: (0, 0)),             # resident w2/w3/b2/b3
        ],
        out_specs=(
            pl.BlockSpec((tn, H), lambda i: (i, 0)),
            pl.BlockSpec((tn, 50), lambda i: (i, 0)),
            pl.BlockSpec((tn, H), lambda i: (i, 0)),
            pl.BlockSpec((tn, H), lambda i: (i, 0)),
        ),
        compiler_params=pltpu.CompilerParams(
            dimension_semantics=("parallel",),
            vmem_limit_bytes=32 * 1024 * 1024,
        ),
        cost_estimate=cost,
    )(zin, emb_pad, wb1, wb23)

    return o_emb, o1, o2, o3


def make_params(hidden_channels, key):
    """Deterministic parameter init mimicking PyTorch default inits.
    w* are stored as (1, K) == PyTorch Linear(1,K).weight.T ; b* as (1, K)."""
    k_emb, k_w1, k_b1, k_w2, k_b2, k_w3, k_b3 = jax.random.split(key, 7)
    emb = jax.random.normal(k_emb, (VOCAB, hidden_channels), dtype=jnp.float32)
    w1 = jax.random.uniform(k_w1, (1, 50), jnp.float32, -1.0, 1.0)
    b1 = jax.random.uniform(k_b1, (1, 50), jnp.float32, -1.0, 1.0)
    w2 = jax.random.uniform(k_w2, (1, hidden_channels), jnp.float32, -1.0, 1.0)
    b2 = jax.random.uniform(k_b2, (1, hidden_channels), jnp.float32, -1.0, 1.0)
    w3 = jax.random.uniform(k_w3, (1, hidden_channels), jnp.float32, -1.0, 1.0)
    b3 = jax.random.uniform(k_b3, (1, hidden_channels), jnp.float32, -1.0, 1.0)
    return dict(emb=emb, w1=w1, b1=b1, w2=w2, b2=b2, w3=w3, b3=b3)


def _reference(z, z1, z2, z3, params):
    ref_emb = params["emb"][z]
    ref1 = z1.reshape(-1, 1) * params["w1"] + params["b1"]
    ref2 = z2.reshape(-1, 1) * params["w2"] + params["b2"]
    ref3 = z3.reshape(-1, 1) * params["w3"] + params["b3"]
    return ref_emb, ref1, ref2, ref3


def _check(n, hidden_channels, key, **kwargs):
    k_p, k_z, k_z1, k_z2, k_z3 = jax.random.split(key, 5)
    params = make_params(hidden_channels, k_p)
    z = jax.random.randint(k_z, (n,), 0, VOCAB, dtype=jnp.int32)
    z1 = jax.random.normal(k_z1, (n,), dtype=jnp.float32)
    z2 = jax.random.normal(k_z2, (n,), dtype=jnp.float32)
    z3 = jax.random.normal(k_z3, (n,), dtype=jnp.float32)

    outs = init_v_forward(z, z1, z2, z3, params, **kwargs)
    jax.block_until_ready(outs)
    o_emb, o1, o2, o3 = outs

    ref_emb, ref1, ref2, ref3 = _reference(z, z1, z2, z3, params)
    assert o_emb.shape == (n, hidden_channels) and o1.shape == (n, 50)
    assert o2.shape == (n, hidden_channels) and o3.shape == (n, hidden_channels)
    assert jnp.allclose(o_emb, ref_emb, atol=1e-5)
    assert jnp.allclose(o1, ref1, atol=1e-5)
    assert jnp.allclose(o2, ref2, atol=1e-5)
    assert jnp.allclose(o3, ref3, atol=1e-5)


if __name__ == "__main__":
    hidden_channels = 32
    key = jax.random.PRNGKey(0)
    k_a, k_b = jax.random.split(key)

    # Small demo shape (N not a multiple of 8: exercises the partial-block path).
    _check(10, hidden_channels, k_a)

    # Multi-tile + ragged last tile (forced small row_tile -> 3 grid steps).
    _check(1030, hidden_channels, k_b, row_tile=512)

    print("KERNEL_OK")
</pallas_src>

<mosaic_0001>
module attributes {stable_mosaic.version = 11 : i64} {
  func.func @_init_v_kernel(%arg0: i32, %arg1: memref<16x4xf32, #tpu.memory_space<vmem>>, %arg2: memref<128x32xf32, #tpu.memory_space<vmem>>, %arg3: memref<2x50xf32, #tpu.memory_space<vmem>>, %arg4: memref<4x32xf32, #tpu.memory_space<vmem>>, %arg5: memref<16x32xf32, #tpu.memory_space<vmem>>, %arg6: memref<16x50xf32, #tpu.memory_space<vmem>>, %arg7: memref<16x32xf32, #tpu.memory_space<vmem>>, %arg8: memref<16x32xf32, #tpu.memory_space<vmem>>) attributes {dimension_semantics = [#tpu.dimension_semantics<parallel>], iteration_bounds = array<i64: 1>, scalar_prefetch = 0 : i64, scratch_operands = 0 : i64, tpu.core_type = #tpu.core_type<tc>, window_params = [{transform_indices = @transform_0, window_bounds = array<i64: 16, 4>}, {pipeline_mode = #tpu.pipeline_mode<synchronous>, transform_indices = @transform_1, window_bounds = array<i64: 128, 32>}, {pipeline_mode = #tpu.pipeline_mode<synchronous>, transform_indices = @transform_2, window_bounds = array<i64: 2, 50>}, {pipeline_mode = #tpu.pipeline_mode<synchronous>, transform_indices = @transform_3, window_bounds = array<i64: 4, 32>}, {transform_indices = @transform_4, window_bounds = array<i64: 16, 32>}, {transform_indices = @transform_5, window_bounds = array<i64: 16, 50>}, {transform_indices = @transform_6, window_bounds = array<i64: 16, 32>}, {transform_indices = @transform_7, window_bounds = array<i64: 16, 32>}]} {
    %c0 = arith.constant 0 : index
    %c0_0 = arith.constant 0 : index
    %0 = vector.load %arg1[%c0, %c0_0] : memref<16x4xf32, #tpu.memory_space<vmem>>, vector<16x4xf32>
    %1 = vector.extract_strided_slice %0 {offsets = [0, 0], sizes = [16, 1], strides = [1, 1]} : vector<16x4xf32> to vector<16x1xf32>
    %2 = arith.fptosi %1 : vector<16x1xf32> to vector<16x1xi32>
    %3 = tpu.iota {dimensions = array<i32: 1>} : vector<16x128xi32>
    %4 = vector.broadcast %2 : vector<16x1xi32> to vector<16x128xi32>
    %5 = arith.cmpi eq, %3, %4 : vector<16x128xi32>
    %6 = arith.extui %5 : vector<16x128xi1> to vector<16x128xi32>
    %7 = arith.sitofp %6 : vector<16x128xi32> to vector<16x128xf32>
    %c0_1 = arith.constant 0 : index
    %c0_2 = arith.constant 0 : index
    %8 = vector.load %arg2[%c0_1, %c0_2] : memref<128x32xf32, #tpu.memory_space<vmem>>, vector<128x32xf32>
    %cst = arith.constant dense<0.000000e+00> : vector<16x32xf32>
    %9 = tpu.matmul %7, %8, %cst {dimension_numbers = #tpu.dot_dimension_numbers<[1], [0], [0], [1], [0, 0, 1, 1], [], []>, precision = #tpu.contract_precision<fp32>} : vector<16x128xf32>, vector<128x32xf32>, vector<16x32xf32> -> vector<16x32xf32>
    %c0_3 = arith.constant 0 : index
    %c0_4 = arith.constant 0 : index
    %10 = vector.load %arg5[%c0_3, %c0_4] : memref<16x32xf32, #tpu.memory_space<vmem>>, vector<16x32xf32>
    tpu.vector_store %arg5[%c0_3, %c0_4], %9 {strides = array<i32>} : memref<16x32xf32, #tpu.memory_space<vmem>>, vector<16x32xf32>,
    %11 = vector.extract_strided_slice %0 {offsets = [0, 1], sizes = [16, 1], strides = [1, 1]} : vector<16x4xf32> to vector<16x1xf32>
    %c0_5 = arith.constant 0 : index
    %c0_6 = arith.constant 0 : index
    %12 = vector.load %arg3[%c0_5, %c0_6] : memref<2x50xf32, #tpu.memory_space<vmem>>, vector<1x50xf32>
    %13 = vector.broadcast %11 : vector<16x1xf32> to vector<16x50xf32>
    %14 = vector.broadcast %12 : vector<1x50xf32> to vector<16x50xf32>
    %15 = arith.mulf %13, %14 : vector<16x50xf32>
    %c1 = arith.constant 1 : index
    %c0_7 = arith.constant 0 : index
    %16 = vector.load %arg3[%c1, %c0_7] : memref<2x50xf32, #tpu.memory_space<vmem>>, vector<1x50xf32>
    %17 = vector.broadcast %16 : vector<1x50xf32> to vector<16x50xf32>
    %18 = arith.addf %15, %17 : vector<16x50xf32>
    %c0_8 = arith.constant 0 : index
    %c0_9 = arith.constant 0 : index
    %19 = vector.load %arg6[%c0_8, %c0_9] : memref<16x50xf32, #tpu.memory_space<vmem>>, vector<16x50xf32>
    tpu.vector_store %arg6[%c0_8, %c0_9], %18 {strides = array<i32>} : memref<16x50xf32, #tpu.memory_space<vmem>>, vector<16x50xf32>,
    %20 = vector.extract_strided_slice %0 {offsets = [0, 2], sizes = [16, 1], strides = [1, 1]} : vector<16x4xf32> to vector<16x1xf32>
    %c0_10 = arith.constant 0 : index
    %c0_11 = arith.constant 0 : index
    %21 = vector.load %arg4[%c0_10, %c0_11] : memref<4x32xf32, #tpu.memory_space<vmem>>, vector<1x32xf32>
    %22 = vector.broadcast %20 : vector<16x1xf32> to vector<16x32xf32>
    %23 = vector.broadcast %21 : vector<1x32xf32> to vector<16x32xf32>
    %24 = arith.mulf %22, %23 : vector<16x32xf32>
    %c2 = arith.constant 2 : index
    %c0_12 = arith.constant 0 : index
    %25 = vector.load %arg4[%c2, %c0_12] : memref<4x32xf32, #tpu.memory_space<vmem>>, vector<1x32xf32>
    %26 = vector.broadcast %25 : vector<1x32xf32> to vector<16x32xf32>
    %27 = arith.addf %24, %26 : vector<16x32xf32>
    %c0_13 = arith.constant 0 : index
    %c0_14 = arith.constant 0 : index
    %28 = vector.load %arg7[%c0_13, %c0_14] : memref<16x32xf32, #tpu.memory_space<vmem>>, vector<16x32xf32>
    tpu.vector_store %arg7[%c0_13, %c0_14], %27 {strides = array<i32>} : memref<16x32xf32, #tpu.memory_space<vmem>>, vector<16x32xf32>,
    %29 = vector.extract_strided_slice %0 {offsets = [0, 3], sizes = [16, 1], strides = [1, 1]} : vector<16x4xf32> to vector<16x1xf32>
    %c1_15 = arith.constant 1 : index
    %c0_16 = arith.constant 0 : index
    %30 = vector.load %arg4[%c1_15, %c0_16] : memref<4x32xf32, #tpu.memory_space<vmem>>, vector<1x32xf32>
    %31 = vector.broadcast %29 : vector<16x1xf32> to vector<16x32xf32>
    %32 = vector.broadcast %30 : vector<1x32xf32> to vector<16x32xf32>
    %33 = arith.mulf %31, %32 : vector<16x32xf32>
    %c3 = arith.constant 3 : index
    %c0_17 = arith.constant 0 : index
    %34 = vector.load %arg4[%c3, %c0_17] : memref<4x32xf32, #tpu.memory_space<vmem>>, vector<1x32xf32>
    %35 = vector.broadcast %34 : vector<1x32xf32> to vector<16x32xf32>
    %36 = arith.addf %33, %35 : vector<16x32xf32>
    %c0_18 = arith.constant 0 : index
    %c0_19 = arith.constant 0 : index
    %37 = vector.load %arg8[%c0_18, %c0_19] : memref<16x32xf32, #tpu.memory_space<vmem>>, vector<16x32xf32>
    tpu.vector_store %arg8[%c0_18, %c0_19], %36 {strides = array<i32>} : memref<16x32xf32, #tpu.memory_space<vmem>>, vector<16x32xf32>,
    return
  }
  func.func @transform_0(%arg0: i32) -> (i32, i32) {
    %c0_i32 = arith.constant 0 : i32
    %c0_i32_0 = arith.constant 0 : i32
    return %arg0, %c0_i32 : i32, i32
  }
  func.func @transform_1(%arg0: i32) -> (i32, i32) {
    %c0_i32 = arith.constant 0 : i32
    %c0_i32_0 = arith.constant 0 : i32
    %c0_i32_1 = arith.constant 0 : i32
    return %c0_i32, %c0_i32_0 : i32, i32
  }
  func.func @transform_2(%arg0: i32) -> (i32, i32) {
    %c0_i32 = arith.constant 0 : i32
    %c0_i32_0 = arith.constant 0 : i32
    %c0_i32_1 = arith.constant 0 : i32
    return %c0_i32, %c0_i32_0 : i32, i32
  }
  func.func @transform_3(%arg0: i32) -> (i32, i32) {
    %c0_i32 = arith.constant 0 : i32
    %c0_i32_0 = arith.constant 0 : i32
    %c0_i32_1 = arith.constant 0 : i32
    return %c0_i32, %c0_i32_0 : i32, i32
  }
  func.func @transform_4(%arg0: i32) -> (i32, i32) {
    %c0_i32 = arith.constant 0 : i32
    %c0_i32_0 = arith.constant 0 : i32
    return %arg0, %c0_i32 : i32, i32
  }
  func.func @transform_5(%arg0: i32) -> (i32, i32) {
    %c0_i32 = arith.constant 0 : i32
    %c0_i32_0 = arith.constant 0 : i32
    return %arg0, %c0_i32 : i32, i32
  }
  func.func @transform_6(%arg0: i32) -> (i32, i32) {
    %c0_i32 = arith.constant 0 : i32
    %c0_i32_0 = arith.constant 0 : i32
    return %arg0, %c0_i32 : i32, i32
  }
  func.func @transform_7(%arg0: i32) -> (i32, i32) {
    %c0_i32 = arith.constant 0 : i32
    %c0_i32_0 = arith.constant 0 : i32
    return %arg0, %c0_i32 : i32, i32
  }
}

</mosaic_0001>

<llo_original>
// kernel: tpu_custom_call.1
$region0: #{tpu_custom_call.1}
  #allocation0 [shape = 'u32[]', space=smem, size = 0x4, offset = 0x4, fixed_abs, tag = 'smem constant byte address 0x4 - core index']
  #allocation1 [shape = 'u32[144,128]{1,0:T(1,128)}', space=vmem, size = 0x12000, scoped, tag = 'internal scratch']
  %s0 = inlined_call_operand.vmem [shape: f32[10,4], index: 0, kind: input, shape index: {}]
  %s1 = inlined_call_operand.vmem [shape: f32[128,32], index: 1, kind: input, shape index: {}]
  %s2 = inlined_call_operand.vmem [shape: f32[2,50], index: 2, kind: input, shape index: {}]
  %s3 = inlined_call_operand.vmem [shape: f32[4,32], index: 3, kind: input, shape index: {}]
  %s4 = inlined_call_operand.hbm [shape: f32[10,32], index: 4, kind: output, shape index: {0}]
  %s5 = inlined_call_operand.hbm [shape: f32[10,50], index: 5, kind: output, shape index: {1}]
  %s6 = inlined_call_operand.hbm [shape: f32[10,32], index: 6, kind: output, shape index: {2}]
  %s7 = inlined_call_operand.hbm [shape: f32[10,32], index: 7, kind: output, shape index: {3}]
  %8 = xla_tuple %s4, %s5, %s6, %s7
  %s9 = sld [smem:[#allocation0]]
  $region50: #{tpu_custom_call.1} parent=0
    _
  %s11 = ssub.s32 1, %s9
  %s12 = scalar_select 0, %s11, %s9
  $region1: #{tpu_custom_call.1} parent=0
    #allocation2 [shape = 'u8[8192]{0}', space=vmem, size = 0x2000, scoped, tag = 'output window, operand 0, single buffered']
    #allocation3 [shape = 's32[1]{0}', space=sflag, size = 0x4, scoped, tag = 'scoped memory for tpu_custom_call.1']
    #allocation4 [shape = 'u8[8192]{0}', space=vmem, size = 0x2000, scoped, tag = 'output window, operand 1, single buffered']
    #allocation5 [shape = 's32[1]{0}', space=sflag, size = 0x4, scoped, tag = 'scoped memory for tpu_custom_call.1']
    #allocation6 [shape = 'u8[8192]{0}', space=vmem, size = 0x2000, scoped, tag = 'output window, operand 2, single buffered']
    #allocation7 [shape = 'u8[8192]{0}', space=vmem, size = 0x2000, scoped, tag = 'output window, operand 3, single buffered']
    #allocation8 [shape = 's32[1]{0}', space=sflag, size = 0x4, scoped, tag = 'scoped memory for tpu_custom_call.1']
    %13 = vsyncpa [#allocation3], 0
    %14 = vsyncpa [#allocation5], 0
    %15 = vsyncpa [#allocation8], 0
    // Predicated region
    $region2: #{tpu_custom_call.1} parent=1 // pred_check
      _
    $region3: #{tpu_custom_call.1} parent=1 // pred_check_branch
      %17 = sbr.rel (0) target = $region5
    $region4: #{tpu_custom_call.1} parent=1 // pred_region
      _
    $region5: #{tpu_custom_call.1} parent=1 // pred_fallthru
      _
    // Predicated region
    $region6: #{tpu_custom_call.1} parent=1 // pred_check
      _
    $region7: #{tpu_custom_call.1} parent=1 // pred_check_branch
      %19 = sbr.rel (0) target = $region9
    $region8: #{tpu_custom_call.1} parent=1 // pred_region
      _
    $region9: #{tpu_custom_call.1} parent=1 // pred_fallthru
      _
    // Predicated region
    $region10: #{tpu_custom_call.1} parent=1 // pred_check
      _
    $region11: #{tpu_custom_call.1} parent=1 // pred_check_branch
      %21 = sbr.rel (0) target = $region13
    $region12: #{tpu_custom_call.1} parent=1 // pred_region
      _
    $region13: #{tpu_custom_call.1} parent=1 // pred_fallthru
      _
    // Predicated region
    $region14: #{tpu_custom_call.1} parent=1 // pred_check
      _
    $region15: #{tpu_custom_call.1} parent=1 // pred_check_branch
      %23 = sbr.rel (0) target = $region17
    $region16: #{tpu_custom_call.1} parent=1 // pred_region
      _
    $region17: #{tpu_custom_call.1} parent=1 // pred_fallthru
      _
    %v24 = vld [vmem:[%s0] sm:$0xff]
    %v25 = vld [vmem:[%s0 + $0x8] sm:$0xff]
    %v26 = vcvt.f32.s32.to.zero.pseudo %v24
    %v27 = vcvt.f32.s32.to.zero.pseudo %v25
    %v28 = vlaneseq
    %v29 = vand.u32 %v28, 127
    %30 = vset.pattern.permute.xlu0 0
    %31 = vperm.xlu0 %30, %v26
    %v32 = vpop.permute.xlu0 %31
    %33 = vset.pattern.permute.xlu0 0
    %34 = vperm.xlu0 %33, %v27
    %v35 = vpop.permute.xlu0 %34
    %vm36 = vcmp.eq.s32.totalorder %v29, %v32
    %vm37 = vcmp.eq.s32.totalorder %v29, %v35
    %v38 = vsel %vm36, 1, 0
    %v39 = vsel %vm37, 1, 0
    %v40 = vcvt.s32.f32 %v38
    %v41 = vcvt.s32.f32 %v39
    %v42 = vld [vmem:[%s1] sm:$0xff]
    %v43 = vld [vmem:[%s1 + $0x8] sm:$0xff]
    %v44 = vld [vmem:[%s1 + $0x10] sm:$0xff]
    %v45 = vld [vmem:[%s1 + $0x18] sm:$0xff]
    %v46 = vld [vmem:[%s1 + $0x20] sm:$0xff]
    %v47 = vld [vmem:[%s1 + $0x28] sm:$0xff]
    %v48 = vld [vmem:[%s1 + $0x30] sm:$0xff]
    %v49 = vld [vmem:[%s1 + $0x38] sm:$0xff]
    %v50 = vld [vmem:[%s1 + $0x40] sm:$0xff]
    %v51 = vld [vmem:[%s1 + $0x48] sm:$0xff]
    %v52 = vld [vmem:[%s1 + $0x50] sm:$0xff]
    %v53 = vld [vmem:[%s1 + $0x58] sm:$0xff]
    %v54 = vld [vmem:[%s1 + $0x60] sm:$0xff]
    %v55 = vld [vmem:[%s1 + $0x68] sm:$0xff]
    %v56 = vld [vmem:[%s1 + $0x70] sm:$0xff]
    %v57 = vld [vmem:[%s1 + $0x78] sm:$0xff]
    %58 = vmatprep.subr.mxu0 0.0
    %v59 = vand.u32 %v42, 4294901760
    %60 = vmatpush1.msra.mxu0 %v59
    %61 = vmatprep.subr.mxu0 0.0
    %v62 = vand.u32 %v43, 4294901760
    %63 = vmatpush1.msra.mxu0 %v62
    %64 = vmatprep.subr.mxu0 0.0
    %v65 = vand.u32 %v44, 4294901760
    %66 = vmatpush1.msra.mxu0 %v65
    %67 = vmatprep.subr.mxu0 0.0
    %v68 = vand.u32 %v45, 4294901760
    %69 = vmatpush1.msra.mxu0 %v68
    %70 = vmatprep.subr.mxu0 0.0
    %v71 = vand.u32 %v46, 4294901760
    %72 = vmatpush1.msra.mxu0 %v71
    %73 = vmatprep.subr.mxu0 0.0
    %v74 = vand.u32 %v47, 4294901760
    %75 = vmatpush1.msra.mxu0 %v74
    %76 = vmatprep.subr.mxu0 0.0
    %v77 = vand.u32 %v48, 4294901760
    %78 = vmatpush1.msra.mxu0 %v77
    %79 = vmatprep.subr.mxu0 0.0
    %v80 = vand.u32 %v49, 4294901760
    %81 = vmatpush1.msra.mxu0 %v80
    %82 = vmatprep.subr.mxu0 0.0
    %v83 = vand.u32 %v50, 4294901760
    %84 = vmatpush1.msra.mxu0 %v83
    %85 = vmatprep.subr.mxu0 0.0
    %v86 = vand.u32 %v51, 4294901760
    %87 = vmatpush1.msra.mxu0 %v86
    %88 = vmatprep.subr.mxu0 0.0
    %v89 = vand.u32 %v52, 4294901760
    %90 = vmatpush1.msra.mxu0 %v89
    %91 = vmatprep.subr.mxu0 0.0
    %v92 = vand.u32 %v53, 4294901760
    %93 = vmatpush1.msra.mxu0 %v92
    %94 = vmatprep.subr.mxu0 0.0
    %v95 = vand.u32 %v54, 4294901760
    %96 = vmatpush1.msra.mxu0 %v95
    %97 = vmatprep.subr.mxu0 0.0
    %v98 = vand.u32 %v55, 4294901760
    %99 = vmatpush1.msra.mxu0 %v98
    %100 = vmatprep.subr.mxu0 0.0
    %v101 = vand.u32 %v56, 4294901760
    %102 = vmatpush1.msra.mxu0 %v101
    %103 = vmatprep.subr.mxu0 0.0
    %v104 = vand.u32 %v57, 4294901760
    %105 = vmatpush1.msra.mxu0 %v104
    %106 = vmatprep.subr.mxu0 0.0
    %107 = vmatpush1.msra.mxu0 0.0
    %108 = vmatprep.subr.mxu0 0.0
    %109 = vmatpush1.msra.mxu0 0.0
    %110 = vmatprep.subr.mxu0 0.0
    %111 = vmatpush1.msra.mxu0 0.0
    %112 = vmatprep.subr.mxu0 0.0
    %113 = vmatpush1.msra.mxu0 0.0
    %114 = vmatprep.subr.mxu0 0.0
    %115 = vmatpush1.msra.mxu0 0.0
    %116 = vmatprep.subr.mxu0 0.0
    %117 = vmatpush1.msra.mxu0 0.0
    %118 = vmatprep.subr.mxu0 0.0
    %119 = vmatpush1.msra.mxu0 0.0
    %120 = vmatprep.subr.mxu0 0.0
    %121 = vmatpush1.msra.mxu0 0.0
    %122 = vmatprep.subr.mxu0 0.0
    %123 = vmatpush1.msra.mxu0 0.0
    %124 = vmatprep.subr.mxu0 0.0
    %125 = vmatpush1.msra.mxu0 0.0
    %126 = vmatprep.subr.mxu0 0.0
    %127 = vmatpush1.msra.mxu0 0.0
    %128 = vmatprep.subr.mxu0 0.0
    %129 = vmatpush1.msra.mxu0 0.0
    %130 = vmatprep.subr.mxu0 0.0
    %131 = vmatpush1.msra.mxu0 0.0
    %132 = vmatprep.subr.mxu0 0.0
    %133 = vmatpush1.msra.mxu0 0.0
    %134 = vmatprep.subr.mxu0 0.0
    %135 = vmatpush1.msra.mxu0 0.0
    %136 = vmatprep.subr.mxu0 0.0
    %137 = vmatpush1.msra.mxu0 0.0
    %138 = vmatprep.mubr.f32.mxu0 0.0
    %v139 = vand.u32 %v40, 4294901760
    %v140 = vsub.f32 %v40, %v139
    %v141 = vand.u32 %v140, 4294901760
    %v142 = vsub.f32 %v140, %v141
    %v143 = vand.u32 %v142, 4294901760
    %144 = vmatmul.mubr.f32.gmra.mrb[0].mxu0 %v143
    %v145 = vpop.f32.mrb[0].mxu0
    %v146 = vadd.f32 0.0, %v145
    %v147 = vpop.f32.mrb[0].mxu0
    %148 = vmatprep.mubr.f32.mxu0 0.0
    %v149 = vand.u32 %v41, 4294901760
    %v150 = vsub.f32 %v41, %v149
    %v151 = vand.u32 %v150, 4294901760
    %v152 = vsub.f32 %v150, %v151
    %v153 = vand.u32 %v152, 4294901760
    %154 = vmatmul.mubr.f32.gmra.mrb[0].mxu0 %v153
    %v155 = vpop.f32.mrb[0].mxu0
    %v156 = vadd.f32 0.0, %v155
    %v157 = vpop.f32.mrb[0].mxu0
    %158 = vdwg.mxu0
    %159 = vmatprep.subr.mxu0 0.0
    %v160 = vand.u32 %v42, 4294901760
    %v161 = vsub.f32 %v42, %v160
    %v162 = vand.u32 %v161, 4294901760
    %v163 = vsub.f32 %v161, %v162
    %v164 = vand.u32 %v163, 4294901760
    %165 = vmatpush1.msra.mxu0 %v164
    %166 = vmatprep.subr.mxu0 0.0
    %v167 = vand.u32 %v43, 4294901760
    %v168 = vsub.f32 %v43, %v167
    %v169 = vand.u32 %v168, 4294901760
    %v170 = vsub.f32 %v168, %v169
    %v171 = vand.u32 %v170, 4294901760
    %172 = vmatpush1.msra.mxu0 %v171
    %173 = vmatprep.subr.mxu0 0.0
    %v174 = vand.u32 %v44, 4294901760
    %v175 = vsub.f32 %v44, %v174
    %v176 = vand.u32 %v175, 4294901760
    %v177 = vsub.f32 %v175, %v176
    %v178 = vand.u32 %v177, 4294901760
    %179 = vmatpush1.msra.mxu0 %v178
    %180 = vmatprep.subr.mxu0 0.0
    %v181 = vand.u32 %v45, 4294901760
    %v182 = vsub.f32 %v45, %v181
    %v183 = vand.u32 %v182, 4294901760
    %v184 = vsub.f32 %v182, %v183
    %v185 = vand.u32 %v184, 4294901760
    %186 = vmatpush1.msra.mxu0 %v185
    %187 = vmatprep.subr.mxu0 0.0
    %v188 = vand.u32 %v46, 4294901760
    %v189 = vsub.f32 %v46, %v188
    %v190 = vand.u32 %v189, 4294901760
    %v191 = vsub.f32 %v189, %v190
    %v192 = vand.u32 %v191, 4294901760
    %193 = vmatpush1.msra.mxu0 %v192
    %194 = vmatprep.subr.mxu0 0.0
    %v195 = vand.u32 %v47, 4294901760
    %v196 = vsub.f32 %v47, %v195
    %v197 = vand.u32 %v196, 4294901760
    %v198 = vsub.f32 %v196, %v197
    %v199 = vand.u32 %v198, 4294901760
    %200 = vmatpush1.msra.mxu0 %v199
    %201 = vmatprep.subr.mxu0 0.0
    %v202 = vand.u32 %v48, 4294901760
    %v203 = vsub.f32 %v48, %v202
    %v204 = vand.u32 %v203, 4294901760
    %v205 = vsub.f32 %v203, %v204
    %v206 = vand.u32 %v205, 4294901760
    %207 = vmatpush1.msra.mxu0 %v206
    %208 = vmatprep.subr.mxu0 0.0
    %v209 = vand.u32 %v49, 4294901760
    %v210 = vsub.f32 %v49, %v209
    %v211 = vand.u32 %v210, 4294901760
    %v212 = vsub.f32 %v210, %v211
    %v213 = vand.u32 %v212, 4294901760
    %214 = vmatpush1.msra.mxu0 %v213
    %215 = vmatprep.subr.mxu0 0.0
    %v216 = vand.u32 %v50, 4294901760
    %v217 = vsub.f32 %v50, %v216
    %v218 = vand.u32 %v217, 4294901760
    %v219 = vsub.f32 %v217, %v218
    %v220 = vand.u32 %v219, 4294901760
    %221 = vmatpush1.msra.mxu0 %v220
    %222 = vmatprep.subr.mxu0 0.0
    %v223 = vand.u32 %v51, 4294901760
    %v224 = vsub.f32 %v51, %v223
    %v225 = vand.u32 %v224, 4294901760
    %v226 = vsub.f32 %v224, %v225
    %v227 = vand.u32 %v226, 4294901760
    %228 = vmatpush1.msra.mxu0 %v227
    %229 = vmatprep.subr.mxu0 0.0
    %v230 = vand.u32 %v52, 4294901760
    %v231 = vsub.f32 %v52, %v230
    %v232 = vand.u32 %v231, 4294901760
    %v233 = vsub.f32 %v231, %v232
    %v234 = vand.u32 %v233, 4294901760
    %235 = vmatpush1.msra.mxu0 %v234
    %236 = vmatprep.subr.mxu0 0.0
    %v237 = vand.u32 %v53, 4294901760
    %v238 = vsub.f32 %v53, %v237
    %v239 = vand.u32 %v238, 4294901760
    %v240 = vsub.f32 %v238, %v239
    %v241 = vand.u32 %v240, 4294901760
    %242 = vmatpush1.msra.mxu0 %v241
    %243 = vmatprep.subr.mxu0 0.0
    %v244 = vand.u32 %v54, 4294901760
    %v245 = vsub.f32 %v54, %v244
    %v246 = vand.u32 %v245, 4294901760
    %v247 = vsub.f32 %v245, %v246
    %v248 = vand.u32 %v247, 4294901760
    %249 = vmatpush1.msra.mxu0 %v248
    %250 = vmatprep.subr.mxu0 0.0
    %v251 = vand.u32 %v55, 4294901760
    %v252 = vsub.f32 %v55, %v251
    %v253 = vand.u32 %v252, 4294901760
    %v254 = vsub.f32 %v252, %v253
    %v255 = vand.u32 %v254, 4294901760
    %256 = vmatpush1.msra.mxu0 %v255
    %257 = vmatprep.subr.mxu0 0.0
    %v258 = vand.u32 %v56, 4294901760
    %v259 = vsub.f32 %v56, %v258
    %v260 = vand.u32 %v259, 4294901760
    %v261 = vsub.f32 %v259, %v260
    %v262 = vand.u32 %v261, 4294901760
    %263 = vmatpush1.msra.mxu0 %v262
    %264 = vmatprep.subr.mxu0 0.0
    %v265 = vand.u32 %v57, 4294901760
    %v266 = vsub.f32 %v57, %v265
    %v267 = vand.u32 %v266, 4294901760
    %v268 = vsub.f32 %v266, %v267
    %v269 = vand.u32 %v268, 4294901760
    %270 = vmatpush1.msra.mxu0 %v269
    %271 = vmatprep.subr.mxu0 0.0
    %272 = vmatpush1.msra.mxu0 0.0
    %273 = vmatprep.subr.mxu0 0.0
    %274 = vmatpush1.msra.mxu0 0.0
    %275 = vmatprep.subr.mxu0 0.0
    %276 = vmatpush1.msra.mxu0 0.0
    %277 = vmatprep.subr.mxu0 0.0
    %278 = vmatpush1.msra.mxu0 0.0
    %279 = vmatprep.subr.mxu0 0.0
    %280 = vmatpush1.msra.mxu0 0.0
    %281 = vmatprep.subr.mxu0 0.0
    %282 = vmatpush1.msra.mxu0 0.0
    %283 = vmatprep.subr.mxu0 0.0
    %284 = vmatpush1.msra.mxu0 0.0
    %285 = vmatprep.subr.mxu0 0.0
    %286 = vmatpush1.msra.mxu0 0.0
    %287 = vmatprep.subr.mxu0 0.0
    %288 = vmatpush1.msra.mxu0 0.0
    %289 = vmatprep.subr.mxu0 0.0
    %290 = vmatpush1.msra.mxu0 0.0
    %291 = vmatprep.subr.mxu0 0.0
    %292 = vmatpush1.msra.mxu0 0.0
    %293 = vmatprep.subr.mxu0 0.0
    %294 = vmatpush1.msra.mxu0 0.0
    %295 = vmatprep.subr.mxu0 0.0
    %296 = vmatpush1.msra.mxu0 0.0
    %297 = vmatprep.subr.mxu0 0.0
    %298 = vmatpush1.msra.mxu0 0.0
    %299 = vmatprep.subr.mxu0 0.0
    %300 = vmatpush1.msra.mxu0 0.0
    %301 = vmatprep.subr.mxu0 0.0
    %302 = vmatpush1.msra.mxu0 0.0
    %303 = vmatprep.mubr.f32.mxu0 0.0
    %v304 = vand.u32 %v40, 4294901760
    %305 = vmatmul.mubr.f32.gmra.mrb[0].mxu0 %v304
    %v306 = vpop.f32.mrb[0].mxu0
    %v307 = vadd.f32 %v146, %v306
    %v308 = vpop.f32.mrb[0].mxu0
    %309 = vmatprep.mubr.f32.mxu0 0.0
    %v310 = vand.u32 %v41, 4294901760
    %311 = vmatmul.mubr.f32.gmra.mrb[0].mxu0 %v310
    %v312 = vpop.f32.mrb[0].mxu0
    %v313 = vadd.f32 %v156, %v312
    %v314 = vpop.f32.mrb[0].mxu0
    %315 = vdwg.mxu0
    %316 = vmatprep.subr.mxu0 0.0
    %v317 = vand.u32 %v42, 4294901760
    %v318 = vsub.f32 %v42, %v317
    %319 = vmatpush1.msra.mxu0 %v318
    %320 = vmatprep.subr.mxu0 0.0
    %v321 = vand.u32 %v43, 4294901760
    %v322 = vsub.f32 %v43, %v321
    %323 = vmatpush1.msra.mxu0 %v322
    %324 = vmatprep.subr.mxu0 0.0
    %v325 = vand.u32 %v44, 4294901760
    %v326 = vsub.f32 %v44, %v325
    %327 = vmatpush1.msra.mxu0 %v326
    %328 = vmatprep.subr.mxu0 0.0
    %v329 = vand.u32 %v45, 4294901760
    %v330 = vsub.f32 %v45, %v329
    %331 = vmatpush1.msra.mxu0 %v330
    %332 = vmatprep.subr.mxu0 0.0
    %v333 = vand.u32 %v46, 4294901760
    %v334 = vsub.f32 %v46, %v333
    %335 = vmatpush1.msra.mxu0 %v334
    %336 = vmatprep.subr.mxu0 0.0
    %v337 = vand.u32 %v47, 4294901760
    %v338 = vsub.f32 %v47, %v337
    %339 = vmatpush1.msra.mxu0 %v338
    %340 = vmatprep.subr.mxu0 0.0
    %v341 = vand.u32 %v48, 4294901760
    %v342 = vsub.f32 %v48, %v341
    %343 = vmatpush1.msra.mxu0 %v342
    %344 = vmatprep.subr.mxu0 0.0
    %v345 = vand.u32 %v49, 4294901760
    %v346 = vsub.f32 %v49, %v345
    %347 = vmatpush1.msra.mxu0 %v346
    %348 = vmatprep.subr.mxu0 0.0
    %v349 = vand.u32 %v50, 4294901760
    %v350 = vsub.f32 %v50, %v349
    %351 = vmatpush1.msra.mxu0 %v350
    %352 = vmatprep.subr.mxu0 0.0
    %v353 = vand.u32 %v51, 4294901760
    %v354 = vsub.f32 %v51, %v353
    %355 = vmatpush1.msra.mxu0 %v354
    %356 = vmatprep.subr.mxu0 0.0
    %v357 = vand.u32 %v52, 4294901760
    %v358 = vsub.f32 %v52, %v357
    %359 = vmatpush1.msra.mxu0 %v358
    %360 = vmatprep.subr.mxu0 0.0
    %v361 = vand.u32 %v53, 4294901760
    %v362 = vsub.f32 %v53, %v361
    %363 = vmatpush1.msra.mxu0 %v362
    %364 = vmatprep.subr.mxu0 0.0
    %v365 = vand.u32 %v54, 4294901760
    %v366 = vsub.f32 %v54, %v365
    %367 = vmatpush1.msra.mxu0 %v366
    %368 = vmatprep.subr.mxu0 0.0
    %v369 = vand.u32 %v55, 4294901760
    %v370 = vsub.f32 %v55, %v369
    %371 = vmatpush1.msra.mxu0 %v370
    %372 = vmatprep.subr.mxu0 0.0
    %v373 = vand.u32 %v56, 4294901760
    %v374 = vsub.f32 %v56, %v373
    %375 = vmatpush1.msra.mxu0 %v374
    %376 = vmatprep.subr.mxu0 0.0
    %v377 = vand.u32 %v57, 4294901760
    %v378 = vsub.f32 %v57, %v377
    %379 = vmatpush1.msra.mxu0 %v378
    %380 = vmatprep.subr.mxu0 0.0
    %381 = vmatpush1.msra.mxu0 0.0
    %382 = vmatprep.subr.mxu0 0.0
    %383 = vmatpush1.msra.mxu0 0.0
    %384 = vmatprep.subr.mxu0 0.0
    %385 = vmatpush1.msra.mxu0 0.0
    %386 = vmatprep.subr.mxu0 0.0
    %387 = vmatpush1.msra.mxu0 0.0
    %388 = vmatprep.subr.mxu0 0.0
    %389 = vmatpush1.msra.mxu0 0.0
    %390 = vmatprep.subr.mxu0 0.0
    %391 = vmatpush1.msra.mxu0 0.0
    %392 = vmatprep.subr.mxu0 0.0
    %393 = vmatpush1.msra.mxu0 0.0
    %394 = vmatprep.subr.mxu0 0.0
    %395 = vmatpush1.msra.mxu0 0.0
    %396 = vmatprep.subr.mxu0 0.0
    %397 = vmatpush1.msra.mxu0 0.0
    %398 = vmatprep.subr.mxu0 0.0
    %399 = vmatpush1.msra.mxu0 0.0
    %400 = vmatprep.subr.mxu0 0.0
    %401 = vmatpush1.msra.mxu0 0.0
    %402 = vmatprep.subr.mxu0 0.0
    %403 = vmatpush1.msra.mxu0 0.0
    %404 = vmatprep.subr.mxu0 0.0
    %405 = vmatpush1.msra.mxu0 0.0
    %406 = vmatprep.subr.mxu0 0.0
    %407 = vmatpush1.msra.mxu0 0.0
    %408 = vmatprep.subr.mxu0 0.0
    %409 = vmatpush1.msra.mxu0 0.0
    %410 = vmatprep.subr.mxu0 0.0
    %411 = vmatpush1.msra.mxu0 0.0
    %412 = vmatprep.mubr.f32.mxu0 0.0
    %v413 = vand.u32 %v40, 4294901760
    %v414 = vsub.f32 %v40, %v413
    %415 = vmatmul.mubr.f32.gmra.mrb[0].mxu0 %v414
    %v416 = vpop.f32.mrb[0].mxu0
    %v417 = vadd.f32 %v307, %v416
    %v418 = vpop.f32.mrb[0].mxu0
    %419 = vmatprep.mubr.f32.mxu0 0.0
    %v420 = vand.u32 %v41, 4294901760
    %v421 = vsub.f32 %v41, %v420
    %422 = vmatmul.mubr.f32.gmra.mrb[0].mxu0 %v421
    %v423 = vpop.f32.mrb[0].mxu0
    %v424 = vadd.f32 %v313, %v423
    %v425 = vpop.f32.mrb[0].mxu0
    %426 = vdwg.mxu0
    %427 = vmatprep.subr.mxu0 0.0
    %v428 = vand.u32 %v42, 4294901760
    %429 = vmatpush1.msra.mxu0 %v428
    %430 = vmatprep.subr.mxu0 0.0
    %v431 = vand.u32 %v43, 4294901760
    %432 = vmatpush1.msra.mxu0 %v431
    %433 = vmatprep.subr.mxu0 0.0
    %v434 = vand.u32 %v44, 4294901760
    %435 = vmatpush1.msra.mxu0 %v434
    %436 = vmatprep.subr.mxu0 0.0
    %v437 = vand.u32 %v45, 4294901760
    %438 = vmatpush1.msra.mxu0 %v437
    %439 = vmatprep.subr.mxu0 0.0
    %v440 = vand.u32 %v46, 4294901760
    %441 = vmatpush1.msra.mxu0 %v440
    %442 = vmatprep.subr.mxu0 0.0
    %v443 = vand.u32 %v47, 4294901760
    %444 = vmatpush1.msra.mxu0 %v443
    %445 = vmatprep.subr.mxu0 0.0
    %v446 = vand.u32 %v48, 4294901760
    %447 = vmatpush1.msra.mxu0 %v446
    %448 = vmatprep.subr.mxu0 0.0
    %v449 = vand.u32 %v49, 4294901760
    %450 = vmatpush1.msra.mxu0 %v449
    %451 = vmatprep.subr.mxu0 0.0
    %v452 = vand.u32 %v50, 4294901760
    %453 = vmatpush1.msra.mxu0 %v452
    %454 = vmatprep.subr.mxu0 0.0
    %v455 = vand.u32 %v51, 4294901760
    %456 = vmatpush1.msra.mxu0 %v455
    %457 = vmatprep.subr.mxu0 0.0
    %v458 = vand.u32 %v52, 4294901760
    %459 = vmatpush1.msra.mxu0 %v458
    %460 = vmatprep.subr.mxu0 0.0
    %v461 = vand.u32 %v53, 4294901760
    %462 = vmatpush1.msra.mxu0 %v461
    %463 = vmatprep.subr.mxu0 0.0
    %v464 = vand.u32 %v54, 4294901760
    %465 = vmatpush1.msra.mxu0 %v464
    %466 = vmatprep.subr.mxu0 0.0
    %v467 = vand.u32 %v55, 4294901760
    %468 = vmatpush1.msra.mxu0 %v467
    %469 = vmatprep.subr.mxu0 0.0
    %v470 = vand.u32 %v56, 4294901760
    %471 = vmatpush1.msra.mxu0 %v470
    %472 = vmatprep.subr.mxu0 0.0
    %v473 = vand.u32 %v57, 4294901760
    %474 = vmatpush1.msra.mxu0 %v473
    %475 = vmatprep.subr.mxu0 0.0
    %476 = vmatpush1.msra.mxu0 0.0
    %477 = vmatprep.subr.mxu0 0.0
    %478 = vmatpush1.msra.mxu0 0.0
    %479 = vmatprep.subr.mxu0 0.0
    %480 = vmatpush1.msra.mxu0 0.0
    %481 = vmatprep.subr.mxu0 0.0
    %482 = vmatpush1.msra.mxu0 0.0
    %483 = vmatprep.subr.mxu0 0.0
    %484 = vmatpush1.msra.mxu0 0.0
    %485 = vmatprep.subr.mxu0 0.0
    %486 = vmatpush1.msra.mxu0 0.0
    %487 = vmatprep.subr.mxu0 0.0
    %488 = vmatpush1.msra.mxu0 0.0
    %489 = vmatprep.subr.mxu0 0.0
    %490 = vmatpush1.msra.mxu0 0.0
    %491 = vmatprep.subr.mxu0 0.0
    %492 = vmatpush1.msra.mxu0 0.0
    %493 = vmatprep.subr.mxu0 0.0
    %494 = vmatpush1.msra.mxu0 0.0
    %495 = vmatprep.subr.mxu0 0.0
    %496 = vmatpush1.msra.mxu0 0.0
    %497 = vmatprep.subr.mxu0 0.0
    %498 = vmatpush1.msra.mxu0 0.0
    %499 = vmatprep.subr.mxu0 0.0
    %500 = vmatpush1.msra.mxu0 0.0
    %501 = vmatprep.subr.mxu0 0.0
    %502 = vmatpush1.msra.mxu0 0.0
    %503 = vmatprep.subr.mxu0 0.0
    %504 = vmatpush1.msra.mxu0 0.0
    %505 = vmatprep.subr.mxu0 0.0
    %506 = vmatpush1.msra.mxu0 0.0
    %507 = vmatprep.mubr.f32.mxu0 0.0
    %v508 = vand.u32 %v40, 4294901760
    %v509 = vsub.f32 %v40, %v508
    %v510 = vand.u32 %v509, 4294901760
    %511 = vmatmul.mubr.f32.gmra.mrb[0].mxu0 %v510
    %v512 = vpop.f32.mrb[0].mxu0
    %v513 = vadd.f32 %v417, %v512
    %v514 = vpop.f32.mrb[0].mxu0
    %515 = vmatprep.mubr.f32.mxu0 0.0
    %v516 = vand.u32 %v41, 4294901760
    %v517 = vsub.f32 %v41, %v516
    %v518 = vand.u32 %v517, 4294901760
    %519 = vmatmul.mubr.f32.gmra.mrb[0].mxu0 %v518
    %v520 = vpop.f32.mrb[0].mxu0
    %v521 = vadd.f32 %v424, %v520
    %v522 = vpop.f32.mrb[0].mxu0
    %523 = vdwg.mxu0
    %524 = vmatprep.subr.mxu0 0.0
    %v525 = vand.u32 %v42, 4294901760
    %v526 = vsub.f32 %v42, %v525
    %v527 = vand.u32 %v526, 4294901760
    %528 = vmatpush1.msra.mxu0 %v527
    %529 = vmatprep.subr.mxu0 0.0
    %v530 = vand.u32 %v43, 4294901760
    %v531 = vsub.f32 %v43, %v530
    %v532 = vand.u32 %v531, 4294901760
    %533 = vmatpush1.msra.mxu0 %v532
    %534 = vmatprep.subr.mxu0 0.0
    %v535 = vand.u32 %v44, 4294901760
    %v536 = vsub.f32 %v44, %v535
    %v537 = vand.u32 %v536, 4294901760
    %538 = vmatpush1.msra.mxu0 %v537
    %539 = vmatprep.subr.mxu0 0.0
    %v540 = vand.u32 %v45, 4294901760
    %v541 = vsub.f32 %v45, %v540
    %v542 = vand.u32 %v541, 4294901760
    %543 = vmatpush1.msra.mxu0 %v542
    %544 = vmatprep.subr.mxu0 0.0
    %v545 = vand.u32 %v46, 4294901760
    %v546 = vsub.f32 %v46, %v545
    %v547 = vand.u32 %v546, 4294901760
    %548 = vmatpush1.msra.mxu0 %v547
    %549 = vmatprep.subr.mxu0 0.0
    %v550 = vand.u32 %v47, 4294901760
    %v551 = vsub.f32 %v47, %v550
    %v552 = vand.u32 %v551, 4294901760
    %553 = vmatpush1.msra.mxu0 %v552
    %554 = vmatprep.subr.mxu0 0.0
    %v555 = vand.u32 %v48, 4294901760
    %v556 = vsub.f32 %v48, %v555
    %v557 = vand.u32 %v556, 4294901760
    %558 = vmatpush1.msra.mxu0 %v557
    %559 = vmatprep.subr.mxu0 0.0
    %v560 = vand.u32 %v49, 4294901760
    %v561 = vsub.f32 %v49, %v560
    %v562 = vand.u32 %v561, 4294901760
    %563 = vmatpush1.msra.mxu0 %v562
    %564 = vmatprep.subr.mxu0 0.0
    %v565 = vand.u32 %v50, 4294901760
    %v566 = vsub.f32 %v50, %v565
    %v567 = vand.u32 %v566, 4294901760
    %568 = vmatpush1.msra.mxu0 %v567
    %569 = vmatprep.subr.mxu0 0.0
    %v570 = vand.u32 %v51, 4294901760
    %v571 = vsub.f32 %v51, %v570
    %v572 = vand.u32 %v571, 4294901760
    %573 = vmatpush1.msra.mxu0 %v572
    %574 = vmatprep.subr.mxu0 0.0
    %v575 = vand.u32 %v52, 4294901760
    %v576 = vsub.f32 %v52, %v575
    %v577 = vand.u32 %v576, 4294901760
    %578 = vmatpush1.msra.mxu0 %v577
    %579 = vmatprep.subr.mxu0 0.0
    %v580 = vand.u32 %v53, 4294901760
    %v581 = vsub.f32 %v53, %v580
    %v582 = vand.u32 %v581, 4294901760
    %583 = vmatpush1.msra.mxu0 %v582
    %584 = vmatprep.subr.mxu0 0.0
    %v585 = vand.u32 %v54, 4294901760
    %v586 = vsub.f32 %v54, %v585
    %v587 = vand.u32 %v586, 4294901760
    %588 = vmatpush1.msra.mxu0 %v587
    %589 = vmatprep.subr.mxu0 0.0
    %v590 = vand.u32 %v55, 4294901760
    %v591 = vsub.f32 %v55, %v590
    %v592 = vand.u32 %v591, 4294901760
    %593 = vmatpush1.msra.mxu0 %v592
    %594 = vmatprep.subr.mxu0 0.0
    %v595 = vand.u32 %v56, 4294901760
    %v596 = vsub.f32 %v56, %v595
    %v597 = vand.u32 %v596, 4294901760
    %598 = vmatpush1.msra.mxu0 %v597
    %599 = vmatprep.subr.mxu0 0.0
    %v600 = vand.u32 %v57, 4294901760
    %v601 = vsub.f32 %v57, %v600
    %v602 = vand.u32 %v601, 4294901760
    %603 = vmatpush1.msra.mxu0 %v602
    %604 = vmatprep.subr.mxu0 0.0
    %605 = vmatpush1.msra.mxu0 0.0
    %606 = vmatprep.subr.mxu0 0.0
    %607 = vmatpush1.msra.mxu0 0.0
    %608 = vmatprep.subr.mxu0 0.0
    %609 = vmatpush1.msra.mxu0 0.0
    %610 = vmatprep.subr.mxu0 0.0
    %611 = vmatpush1.msra.mxu0 0.0
    %612 = vmatprep.subr.mxu0 0.0
    %613 = vmatpush1.msra.mxu0 0.0
    %614 = vmatprep.subr.mxu0 0.0
    %615 = vmatpush1.msra.mxu0 0.0
    %616 = vmatprep.subr.mxu0 0.0
    %617 = vmatpush1.msra.mxu0 0.0
    %618 = vmatprep.subr.mxu0 0.0
    %619 = vmatpush1.msra.mxu0 0.0
    %620 = vmatprep.subr.mxu0 0.0
    %621 = vmatpush1.msra.mxu0 0.0
    %622 = vmatprep.subr.mxu0 0.0
    %623 = vmatpush1.msra.mxu0 0.0
    %624 = vmatprep.subr.mxu0 0.0
    %625 = vmatpush1.msra.mxu0 0.0
    %626 = vmatprep.subr.mxu0 0.0
    %627 = vmatpush1.msra.mxu0 0.0
    %628 = vmatprep.subr.mxu0 0.0
    %629 = vmatpush1.msra.mxu0 0.0
    %630 = vmatprep.subr.mxu0 0.0
    %631 = vmatpush1.msra.mxu0 0.0
    %632 = vmatprep.subr.mxu0 0.0
    %633 = vmatpush1.msra.mxu0 0.0
    %634 = vmatprep.subr.mxu0 0.0
    %635 = vmatpush1.msra.mxu0 0.0
    %636 = vmatprep.mubr.f32.mxu0 0.0
    %v637 = vand.u32 %v40, 4294901760
    %638 = vmatmul.mubr.f32.gmra.mrb[0].mxu0 %v637
    %v639 = vpop.f32.mrb[0].mxu0
    %v640 = vadd.f32 %v513, %v639
    %v641 = vpop.f32.mrb[0].mxu0
    %642 = vmatprep.mubr.f32.mxu0 0.0
    %v643 = vand.u32 %v41, 4294901760
    %644 = vmatmul.mubr.f32.gmra.mrb[0].mxu0 %v643
    %v645 = vpop.f32.mrb[0].mxu0
    %v646 = vadd.f32 %v521, %v645
    %v647 = vpop.f32.mrb[0].mxu0
    %648 = vdwg.mxu0
    %649 = vmatprep.subr.mxu0 0.0
    %v650 = vand.u32 %v42, 4294901760
    %651 = vmatpush1.msra.mxu0 %v650
    %652 = vmatprep.subr.mxu0 0.0
    %v653 = vand.u32 %v43, 4294901760
    %654 = vmatpush1.msra.mxu0 %v653
    %655 = vmatprep.subr.mxu0 0.0
    %v656 = vand.u32 %v44, 4294901760
    %657 = vmatpush1.msra.mxu0 %v656
    %658 = vmatprep.subr.mxu0 0.0
    %v659 = vand.u32 %v45, 4294901760
    %660 = vmatpush1.msra.mxu0 %v659
    %661 = vmatprep.subr.mxu0 0.0
    %v662 = vand.u32 %v46, 4294901760
    %663 = vmatpush1.msra.mxu0 %v662
    %664 = vmatprep.subr.mxu0 0.0
    %v665 = vand.u32 %v47, 4294901760
    %666 = vmatpush1.msra.mxu0 %v665
    %667 = vmatprep.subr.mxu0 0.0
    %v668 = vand.u32 %v48, 4294901760
    %669 = vmatpush1.msra.mxu0 %v668
    %670 = vmatprep.subr.mxu0 0.0
    %v671 = vand.u32 %v49, 4294901760
    %672 = vmatpush1.msra.mxu0 %v671
    %673 = vmatprep.subr.mxu0 0.0
    %v674 = vand.u32 %v50, 4294901760
    %675 = vmatpush1.msra.mxu0 %v674
    %676 = vmatprep.subr.mxu0 0.0
    %v677 = vand.u32 %v51, 4294901760
    %678 = vmatpush1.msra.mxu0 %v677
    %679 = vmatprep.subr.mxu0 0.0
    %v680 = vand.u32 %v52, 4294901760
    %681 = vmatpush1.msra.mxu0 %v680
    %682 = vmatprep.subr.mxu0 0.0
    %v683 = vand.u32 %v53, 4294901760
    %684 = vmatpush1.msra.mxu0 %v683
    %685 = vmatprep.subr.mxu0 0.0
    %v686 = vand.u32 %v54, 4294901760
    %687 = vmatpush1.msra.mxu0 %v686
    %688 = vmatprep.subr.mxu0 0.0
    %v689 = vand.u32 %v55, 4294901760
    %690 = vmatpush1.msra.mxu0 %v689
    %691 = vmatprep.subr.mxu0 0.0
    %v692 = vand.u32 %v56, 4294901760
    %693 = vmatpush1.msra.mxu0 %v692
    %694 = vmatprep.subr.mxu0 0.0
    %v695 = vand.u32 %v57, 4294901760
    %696 = vmatpush1.msra.mxu0 %v695
    %697 = vmatprep.subr.mxu0 0.0
    %698 = vmatpush1.msra.mxu0 0.0
    %699 = vmatprep.subr.mxu0 0.0
    %700 = vmatpush1.msra.mxu0 0.0
    %701 = vmatprep.subr.mxu0 0.0
    %702 = vmatpush1.msra.mxu0 0.0
    %703 = vmatprep.subr.mxu0 0.0
    %704 = vmatpush1.msra.mxu0 0.0
    %705 = vmatprep.subr.mxu0 0.0
    %706 = vmatpush1.msra.mxu0 0.0
    %707 = vmatprep.subr.mxu0 0.0
    %708 = vmatpush1.msra.mxu0 0.0
    %709 = vmatprep.subr.mxu0 0.0
    %710 = vmatpush1.msra.mxu0 0.0
    %711 = vmatprep.subr.mxu0 0.0
    %712 = vmatpush1.msra.mxu0 0.0
    %713 = vmatprep.subr.mxu0 0.0
    %714 = vmatpush1.msra.mxu0 0.0
    %715 = vmatprep.subr.mxu0 0.0
    %716 = vmatpush1.msra.mxu0 0.0
    %717 = vmatprep.subr.mxu0 0.0
    %718 = vmatpush1.msra.mxu0 0.0
    %719 = vmatprep.subr.mxu0 0.0
    %720 = vmatpush1.msra.mxu0 0.0
    %721 = vmatprep.subr.mxu0 0.0
    %722 = vmatpush1.msra.mxu0 0.0
    %723 = vmatprep.subr.mxu0 0.0
    %724 = vmatpush1.msra.mxu0 0.0
    %725 = vmatprep.subr.mxu0 0.0
    %726 = vmatpush1.msra.mxu0 0.0
    %727 = vmatprep.subr.mxu0 0.0
    %728 = vmatpush1.msra.mxu0 0.0
    %729 = vmatprep.mubr.f32.mxu0 0.0
    %v730 = vand.u32 %v40, 4294901760
    %731 = vmatmul.mubr.f32.gmra.mrb[0].mxu0 %v730
    %v732 = vpop.f32.mrb[0].mxu0
    %v733 = vadd.f32 %v640, %v732
    %v734 = vpop.f32.mrb[0].mxu0
    %735 = vmatprep.mubr.f32.mxu0 0.0
    %v736 = vand.u32 %v41, 4294901760
    %737 = vmatmul.mubr.f32.gmra.mrb[0].mxu0 %v736
    %v738 = vpop.f32.mrb[0].mxu0
    %v739 = vadd.f32 %v646, %v738
    %v740 = vpop.f32.mrb[0].mxu0
    %741 = vdwg.mxu0
    %vm742 = vcmask 261120
    %743 = vst.msk [vmem:[#allocation2] sm:$0xff] %vm742, %v733
    %744 = vst.msk [vmem:[#allocation2 + $0x8] sm:$0xff] %vm742, %v739
    %v745 = vld [vmem:[%s2] sm:$0x1]
    %747 = vset.pattern.permute.xlu0 1
    %748 = vperm.xlu0 %747, %v24
    %v749 = vpop.permute.xlu0 %748
    %752 = vset.pattern.permute.xlu0 1
    %753 = vperm.xlu0 %752, %v25
    %v754 = vpop.permute.xlu0 %753
    %v756 = vlaneseq
    %v757 = vshrl.u32 %v756, 7
    %v758 = vsub.s32 0, %v757
    %v759 = vrot.slane %v745, %v758
    %v760 = vmul.f32 %v749, %v759
    %v761 = vmul.f32 %v754, %v759
    %v762 = vld [vmem:[%s2 + $0x1] sm:$0x1]
    %v763 = vlaneseq
    %v764 = vshrl.u32 %v763, 7
    %v765 = vsub.s32 0, %v764
    %v766 = vrot.slane %v762, %v765
    %v767 = vadd.f32 %v760, %v766
    %v768 = vadd.f32 %v761, %v766
    %vm769 = vcmask 408576
    %770 = vst.msk [vmem:[#allocation4] sm:$0xff] %vm769, %v767
    %771 = vst.msk [vmem:[#allocation4 + $0x8] sm:$0xff] %vm769, %v768
    %v772 = vld [vmem:[%s3] sm:$0x1]
    %773 = vset.pattern.permute.xlu0 2
    %774 = vperm.xlu0 %773, %v24
    %v775 = vpop.permute.xlu0 %774
    %777 = vset.pattern.permute.xlu0 2
    %778 = vperm.xlu0 %777, %v25
    %v779 = vpop.permute.xlu0 %778
    %v781 = vlaneseq
    %v782 = vshrl.u32 %v781, 7
    %v783 = vsub.s32 0, %v782
    %v784 = vrot.slane %v772, %v783
    %v785 = vmul.f32 %v775, %v784
    %v786 = vmul.f32 %v779, %v784
    %v787 = vld [vmem:[%s3 + $0x2] sm:$0x1]
    %v788 = vlaneseq
    %v789 = vshrl.u32 %v788, 7
    %v790 = vsub.s32 0, %v789
    %v791 = vrot.slane %v787, %v790
    %v792 = vadd.f32 %v785, %v791
    %v793 = vadd.f32 %v786, %v791
    %794 = vst.msk [vmem:[#allocation6] sm:$0xff] %vm742, %v792
    %795 = vst.msk [vmem:[#allocation6 + $0x8] sm:$0xff] %vm742, %v793
    %v796 = vld [vmem:[%s3 + $0x1] sm:$0x1]
    %797 = vset.pattern.permute.xlu0 3
    %798 = vperm.xlu0 %797, %v24
    %v799 = vpop.permute.xlu0 %798
    %801 = vset.pattern.permute.xlu0 3
    %802 = vperm.xlu0 %801, %v25
    %v803 = vpop.permute.xlu0 %802
    %v805 = vlaneseq
    %v806 = vshrl.u32 %v805, 7
    %v807 = vsub.s32 0, %v806
    %v808 = vrot.slane %v796, %v807
    %v809 = vmul.f32 %v799, %v808
    %v810 = vmul.f32 %v803, %v808
    %v811 = vld [vmem:[%s3 + $0x3] sm:$0x1]
    %v812 = vlaneseq
    %v813 = vshrl.u32 %v812, 7
    %v814 = vsub.s32 0, %v813
    %v815 = vrot.slane %v811, %v814
    %v816 = vadd.f32 %v809, %v815
    %v817 = vadd.f32 %v810, %v815
    %818 = vst.msk [vmem:[#allocation7] sm:$0xff] %vm742, %v816
    %819 = vst.msk [vmem:[#allocation7 + $0x8] sm:$0xff] %vm742, %v817
    // Predicated region
    $region18: #{tpu_custom_call.1} parent=1 // pred_check
      _
    $region19: #{tpu_custom_call.1} parent=1 // pred_check_branch
      %821 = sbr.rel (0) target = $region21
    $region20: #{tpu_custom_call.1} parent=1 // pred_region
      %s823 = ssub.s32 256, 256
      %824 = vsyncadd [#allocation3], %s823
      %s825 = sshll.u32 [#allocation2], 4
      %s826 = int_to_ptr.vmem [resolvable:$true] %s825
      %831 = dma.vmem_to_hbm [thread:$0]  %s826, 256, %s4, [#allocation3], 128, 128, 8
    $region21: #{tpu_custom_call.1} parent=1 // pred_fallthru
      _
    // Predicated region
    $region22: #{tpu_custom_call.1} parent=1 // pred_check
      _
    $region23: #{tpu_custom_call.1} parent=1 // pred_check_branch
      %833 = sbr.rel (0) target = $region25
    $region24: #{tpu_custom_call.1} parent=1 // pred_region
      %s835 = ssub.s32 256, 256
      %836 = vsyncadd [#allocation5], %s835
      %s837 = sshll.u32 [#allocation4], 4
      %s838 = int_to_ptr.vmem [resolvable:$true] %s837
      %843 = dma.vmem_to_hbm [thread:$0]  %s838, 256, %s5, [#allocation5], 128, 128, 8
    $region25: #{tpu_custom_call.1} parent=1 // pred_fallthru
      _
    // Predicated region
    $region26: #{tpu_custom_call.1} parent=1 // pred_check
      _
    $region27: #{tpu_custom_call.1} parent=1 // pred_check_branch
      %845 = sbr.rel (0) target = $region29
    $region28: #{tpu_custom_call.1} parent=1 // pred_region
      %s847 = ssub.s32 256, 256
      %848 = vsyncadd [#allocation5], %s847
      %s849 = sshll.u32 [#allocation6], 4
      %s850 = int_to_ptr.vmem [resolvable:$true] %s849
      %855 = dma.vmem_to_hbm [thread:$0]  %s850, 256, %s6, [#allocation5], 128, 128, 8
    $region29: #{tpu_custom_call.1} parent=1 // pred_fallthru
      _
    // Predicated region
    $region30: #{tpu_custom_call.1} parent=1 // pred_check
      _
    $region31: #{tpu_custom_call.1} parent=1 // pred_check_branch
      %857 = sbr.rel (0) target = $region33
    $region32: #{tpu_custom_call.1} parent=1 // pred_region
      %s859 = ssub.s32 256, 256
      %860 = vsyncadd [#allocation8], %s859
      %s861 = sshll.u32 [#allocation7], 4
      %s862 = int_to_ptr.vmem [resolvable:$true] %s861
      %867 = dma.vmem_to_hbm [thread:$0]  %s862, 256, %s7, [#allocation8], 128, 128, 8
    $region33: #{tpu_custom_call.1} parent=1 // pred_fallthru
      _
    // Predicated region
    $region34: #{tpu_custom_call.1} parent=1 // pred_check
      _
    $region35: #{tpu_custom_call.1} parent=1 // pred_check_branch
      %869 = sbr.rel (0) target = $region37
    $region36: #{tpu_custom_call.1} parent=1 // pred_region
      %870 = dma.done [#allocation3], 256
    $region37: #{tpu_custom_call.1} parent=1 // pred_fallthru
      _
    // Predicated region
    $region38: #{tpu_custom_call.1} parent=1 // pred_check
      _
    $region39: #{tpu_custom_call.1} parent=1 // pred_check_branch
      %872 = sbr.rel (0) target = $region41
    $region40: #{tpu_custom_call.1} parent=1 // pred_region
      %873 = dma.done [#allocation5], 256
    $region41: #{tpu_custom_call.1} parent=1 // pred_fallthru
      _
    // Predicated region
    $region42: #{tpu_custom_call.1} parent=1 // pred_check
      _
    $region43: #{tpu_custom_call.1} parent=1 // pred_check_branch
      %875 = sbr.rel (0) target = $region45
    $region44: #{tpu_custom_call.1} parent=1 // pred_region
      %876 = dma.done [#allocation5], 256
    $region45: #{tpu_custom_call.1} parent=1 // pred_fallthru
      _
    // Predicated region
    $region46: #{tpu_custom_call.1} parent=1 // pred_check
      _
    $region47: #{tpu_custom_call.1} parent=1 // pred_check_branch
      %878 = sbr.rel (0) target = $region49
    $region48: #{tpu_custom_call.1} parent=1 // pred_region
      %879 = dma.done [#allocation8], 256
    $region49: #{tpu_custom_call.1} parent=1 // pred_fallthru
      _
    %880 = vsyncpa [#allocation3], 1
    %881 = vsyncpa [#allocation5], 1
    %882 = vsyncpa [#allocation8], 1

</llo_original>
